<compile_context>
chip_gen: v5e
topology: v5e:2x2
jax: 0.10.0
libtpu: 0.0.40
codegen_flags: <defaults>
</compile_context>

<pallas_src>
import functools

import jax
import jax.numpy as jnp
from jax.experimental import pallas as pl
from jax.experimental.pallas import tpu as pltpu

HIDDEN = 128
LANE = 128          # TPU lane width; output features padded to a multiple of this
MAX_TILE_B = 512    # default batch rows per grid step (>=256 keeps the MXU busy)


def _round_up(x, m):
    return ((x + m - 1) // m) * m


# ----------------------------------------------------------------------------
# Fused 3-layer MLP body: bf16 MXU inputs, f32 accumulation, f32 bias + ReLU.
# ----------------------------------------------------------------------------
def _mlp_q(x_ref, w1_ref, b1_ref, w2_ref, b2_ref, w3_ref, b3_ref):
    x = x_ref[...]                                              # (TB, obs_dim) bf16
    h1 = jnp.dot(x, w1_ref[...], preferred_element_type=jnp.float32) + b1_ref[...]
    h1 = jnp.maximum(h1, 0.0).astype(x.dtype)                   # ReLU in f32 -> bf16
    h2 = jnp.dot(h1, w2_ref[...], preferred_element_type=jnp.float32) + b2_ref[...]
    h2 = jnp.maximum(h2, 0.0).astype(x.dtype)
    q = jnp.dot(h2, w3_ref[...], preferred_element_type=jnp.float32) + b3_ref[...]
    return q                                                    # (TB, A_pad) f32


def mlp_kernel(x_ref, w1_ref, b1_ref, w2_ref, b2_ref, w3_ref, b3_ref, q_ref):
    q = _mlp_q(x_ref, w1_ref, b1_ref, w2_ref, b2_ref, w3_ref, b3_ref)
    q_ref[...] = q.astype(q_ref.dtype)                          # lane-dense (TB, A_pad)


def mlp_gather_kernel(x_ref, w1_ref, b1_ref, w2_ref, b2_ref, w3_ref, b3_ref,
                      act_ref, out_ref):
    q = _mlp_q(x_ref, w1_ref, b1_ref, w2_ref, b2_ref, w3_ref, b3_ref)
    act = act_ref[...]                                          # (TB, 1) int32
    col = jax.lax.broadcasted_iota(jnp.int32, q.shape, dimension=1)
    # One-hot gather (finite Q assumed; out-of-range action would yield 0.0
    # instead of raising like torch.gather).
    onehot = (col == act).astype(q.dtype)
    qa = jnp.sum(q * onehot, axis=1, keepdims=True)             # (TB, 1)
    # Broadcast across the 128 lanes so the store is an unmasked full-lane vst;
    # the wrapper slices column 0.
    out_ref[...] = pl.broadcast_to(qa, out_ref.shape).astype(out_ref.dtype)


# ----------------------------------------------------------------------------
# Host-side wrapper (single fused pallas_call per forward).
# ----------------------------------------------------------------------------
def _prep(obs, params, tile_b):
    """Pad batch / output lanes, cast MXU inputs to bf16."""
    w1, b1, w2, b2, w3, b3 = params
    B, obs_dim = obs.shape
    act_dim = w3.shape[1]
    A_pad = _round_up(act_dim, LANE)

    TB = tile_b if tile_b is not None else min(MAX_TILE_B, _round_up(B, 8))
    B_pad = _round_up(B, TB)

    obs_p = obs
    if B_pad != B:
        obs_p = jnp.pad(obs_p, ((0, B_pad - B), (0, 0)))
    obs_p = obs_p.astype(jnp.bfloat16)

    if A_pad != act_dim:
        w3 = jnp.pad(w3, ((0, 0), (0, A_pad - act_dim)))
        b3 = jnp.pad(b3, ((0, 0), (0, A_pad - act_dim)))

    wb = (w1.astype(jnp.bfloat16), b1.astype(jnp.float32),
          w2.astype(jnp.bfloat16), b2.astype(jnp.float32),
          w3.astype(jnp.bfloat16), b3.astype(jnp.float32))
    return obs_p, wb, B, B_pad, TB, obs_dim, act_dim, A_pad


@functools.partial(jax.jit, static_argnames=("tile_b",))
def double_dqn_forward(obs, params, action=None, *, tile_b=None):
    """Matches DoubleDQNAgent.forward.

    obs: (B, obs_dim) f32; action: optional (B,) int.  Returns (B, act_dim)
    Q-values, or (B, 1) gathered Q(s, a) when `action` is given.
    `tile_b` (static, multiple of 8) overrides the batch tile size.
    """
    obs_p, wb, B, B_pad, TB, obs_dim, act_dim, A_pad = _prep(obs, params, tile_b)
    w1, b1, w2, b2, w3, b3 = wb
    grid = (B_pad // TB,)

    full_spec = lambda a: pl.BlockSpec(a.shape, lambda i: (0, 0))  # VMEM-resident
    param_specs = [full_spec(w1), full_spec(b1), full_spec(w2),
                   full_spec(b2), full_spec(w3), full_spec(b3)]
    obs_spec = pl.BlockSpec((TB, obs_dim), lambda i: (i, 0))
    cparams = pltpu.CompilerParams(dimension_semantics=("parallel",))

    if action is None:
        q_pad = pl.pallas_call(
            mlp_kernel,
            out_shape=jax.ShapeDtypeStruct((B_pad, A_pad), jnp.float32),
            grid=grid,
            in_specs=[obs_spec] + param_specs,
            out_specs=pl.BlockSpec((TB, A_pad), lambda i: (i, 0)),
            compiler_params=cparams,
        )(obs_p, *wb)
        return q_pad[:B, :act_dim]

    act = action.reshape(-1, 1).astype(jnp.int32)
    if B_pad != B:
        act = jnp.pad(act, ((0, B_pad - B), (0, 0)))      # pad with valid action 0
    out_pad = pl.pallas_call(
        mlp_gather_kernel,
        out_shape=jax.ShapeDtypeStruct((B_pad, LANE), jnp.float32),
        grid=grid,
        in_specs=[obs_spec] + param_specs
                 + [pl.BlockSpec((TB, 1), lambda i: (i, 0))],
        out_specs=pl.BlockSpec((TB, LANE), lambda i: (i, 0)),
        compiler_params=cparams,
    )(obs_p, *wb, act)
    return out_pad[:B, :1]


# ----------------------------------------------------------------------------
# Parameter init (PyTorch-style uniform(-1/sqrt(fan_in), 1/sqrt(fan_in)),
# weights stored (in_features, out_features) so the kernel computes x @ W + b).
# ----------------------------------------------------------------------------
def init_params(key, obs_dim, act_dim, hidden=HIDDEN):
    def linear(key, fan_in, fan_out):
        kw, kb = jax.random.split(key)
        bound = 1.0 / jnp.sqrt(fan_in)
        w = jax.random.uniform(kw, (fan_in, fan_out), jnp.float32, -bound, bound)
        b = jax.random.uniform(kb, (1, fan_out), jnp.float32, -bound, bound)
        return w, b

    k1, k2, k3 = jax.random.split(key, 3)
    w1, b1 = linear(k1, obs_dim, hidden)
    w2, b2 = linear(k2, hidden, hidden)
    w3, b3 = linear(k3, hidden, act_dim)
    return (w1, b1, w2, b2, w3, b3)


def reference_forward(obs, params, action=None):
    """Pure-JAX reference with the same precision pipeline as the kernel
    (bf16 MXU inputs, f32 accumulation, f32 bias/ReLU)."""
    w1, b1, w2, b2, w3, b3 = params
    bf = jnp.bfloat16
    h1 = jnp.maximum(jnp.dot(obs.astype(bf), w1.astype(bf),
                             preferred_element_type=jnp.float32) + b1, 0.0)
    h2 = jnp.maximum(jnp.dot(h1.astype(bf), w2.astype(bf),
                             preferred_element_type=jnp.float32) + b2, 0.0)
    q = jnp.dot(h2.astype(bf), w3.astype(bf),
                preferred_element_type=jnp.float32) + b3
    if action is None:
        return q
    return jnp.take_along_axis(q, action.reshape(-1, 1).astype(jnp.int32), axis=1)


if __name__ == "__main__":
    key = jax.random.PRNGKey(0)
    k_obs, k_act, k_par = jax.random.split(key, 3)

    batch, obs_dim, act_dim = 8, 4, 2          # CartPole-like spaces
    obs = jax.random.normal(k_obs, (batch, obs_dim), jnp.float32)
    action = jax.random.randint(k_act, (batch,), 0, act_dim, jnp.int32)
    params = init_params(k_par, obs_dim, act_dim)

    # forward(observation) -> all action values
    q = double_dqn_forward(obs, params)
    jax.block_until_ready(q)
    # forward(observation, action) -> gathered action values, shape (B, 1)
    q_a = double_dqn_forward(obs, params, action)
    jax.block_until_ready(q_a)

    q_ref = reference_forward(obs, params)
    qa_ref = reference_forward(obs, params, action)
    assert q.shape == (batch, act_dim) and q_a.shape == (batch, 1)
    assert jnp.allclose(q, q_ref, atol=1e-3, rtol=1e-3)
    assert jnp.allclose(q_a, qa_ref, atol=1e-3, rtol=1e-3)

    # Exercise the batch-tiled grid + row-padding path (grid=(3,), tile_b=8).
    batch2 = 20
    obs2 = jax.random.normal(jax.random.PRNGKey(1), (batch2, obs_dim), jnp.float32)
    action2 = jax.random.randint(jax.random.PRNGKey(2), (batch2,), 0, act_dim, jnp.int32)
    q2 = double_dqn_forward(obs2, params, tile_b=8)
    qa2 = double_dqn_forward(obs2, params, action2, tile_b=8)
    jax.block_until_ready((q2, qa2))
    assert q2.shape == (batch2, act_dim) and qa2.shape == (batch2, 1)
    assert jnp.allclose(q2, reference_forward(obs2, params), atol=1e-3, rtol=1e-3)
    assert jnp.allclose(qa2, reference_forward(obs2, params, action2), atol=1e-3, rtol=1e-3)

    # NOTE: select_action's epsilon-greedy branch and epsilon_decrease are
    # host-side Python control state (no tensor compute); the greedy action is
    # jnp.argmax over the Q-values returned above.
    print("KERNEL_OK")
</pallas_src>

<mosaic_0001>
module attributes {stable_mosaic.version = 11 : i64} {
  func.func @mlp_kernel(%arg0: i32, %arg1: memref<8x4xbf16, #tpu.memory_space<vmem>>, %arg2: memref<4x128xbf16, #tpu.memory_space<vmem>>, %arg3: memref<1x128xf32, #tpu.memory_space<vmem>>, %arg4: memref<128x128xbf16, #tpu.memory_space<vmem>>, %arg5: memref<1x128xf32, #tpu.memory_space<vmem>>, %arg6: memref<128x128xbf16, #tpu.memory_space<vmem>>, %arg7: memref<1x128xf32, #tpu.memory_space<vmem>>, %arg8: memref<8x128xf32, #tpu.memory_space<vmem>>) attributes {dimension_semantics = [#tpu.dimension_semantics<parallel>], iteration_bounds = array<i64: 1>, scalar_prefetch = 0 : i64, scratch_operands = 0 : i64, tpu.core_type = #tpu.core_type<tc>, window_params = [{transform_indices = @transform_0, window_bounds = array<i64: 8, 4>}, {pipeline_mode = #tpu.pipeline_mode<synchronous>, transform_indices = @transform_1, window_bounds = array<i64: 4, 128>}, {pipeline_mode = #tpu.pipeline_mode<synchronous>, transform_indices = @transform_2, window_bounds = array<i64: 1, 128>}, {pipeline_mode = #tpu.pipeline_mode<synchronous>, transform_indices = @transform_3, window_bounds = array<i64: 128, 128>}, {pipeline_mode = #tpu.pipeline_mode<synchronous>, transform_indices = @transform_4, window_bounds = array<i64: 1, 128>}, {pipeline_mode = #tpu.pipeline_mode<synchronous>, transform_indices = @transform_5, window_bounds = array<i64: 128, 128>}, {pipeline_mode = #tpu.pipeline_mode<synchronous>, transform_indices = @transform_6, window_bounds = array<i64: 1, 128>}, {transform_indices = @transform_7, window_bounds = array<i64: 8, 128>}]} {
    %c0 = arith.constant 0 : index
    %c0_0 = arith.constant 0 : index
    %0 = vector.load %arg1[%c0, %c0_0] : memref<8x4xbf16, #tpu.memory_space<vmem>>, vector<8x4xbf16>
    %c0_1 = arith.constant 0 : index
    %c0_2 = arith.constant 0 : index
    %1 = vector.load %arg2[%c0_1, %c0_2] : memref<4x128xbf16, #tpu.memory_space<vmem>>, vector<4x128xbf16>
    %cst = arith.constant dense<0.000000e+00> : vector<8x128xf32>
    %2 = tpu.matmul %0, %1, %cst {dimension_numbers = #tpu.dot_dimension_numbers<[1], [0], [0], [1], [0, 0, 1, 1], [], []>} : vector<8x4xbf16>, vector<4x128xbf16>, vector<8x128xf32> -> vector<8x128xf32>
    %c0_3 = arith.constant 0 : index
    %c0_4 = arith.constant 0 : index
    %3 = vector.load %arg3[%c0_3, %c0_4] : memref<1x128xf32, #tpu.memory_space<vmem>>, vector<1x128xf32>
    %4 = vector.broadcast %3 : vector<1x128xf32> to vector<8x128xf32>
    %5 = arith.addf %2, %4 : vector<8x128xf32>
    %cst_5 = arith.constant 0.000000e+00 : f32
    %6 = vector.broadcast %cst_5 : f32 to vector<8x128xf32>
    %7 = arith.maximumf %5, %6 : vector<8x128xf32>
    %8 = arith.truncf %7 : vector<8x128xf32> to vector<8x128xbf16>
    %c0_6 = arith.constant 0 : index
    %c0_7 = arith.constant 0 : index
    %9 = vector.load %arg4[%c0_6, %c0_7] : memref<128x128xbf16, #tpu.memory_space<vmem>>, vector<128x128xbf16>
    %cst_8 = arith.constant dense<0.000000e+00> : vector<8x128xf32>
    %10 = tpu.matmul %8, %9, %cst_8 {dimension_numbers = #tpu.dot_dimension_numbers<[1], [0], [0], [1], [0, 0, 1, 1], [], []>} : vector<8x128xbf16>, vector<128x128xbf16>, vector<8x128xf32> -> vector<8x128xf32>
    %c0_9 = arith.constant 0 : index
    %c0_10 = arith.constant 0 : index
    %11 = vector.load %arg5[%c0_9, %c0_10] : memref<1x128xf32, #tpu.memory_space<vmem>>, vector<1x128xf32>
    %12 = vector.broadcast %11 : vector<1x128xf32> to vector<8x128xf32>
    %13 = arith.addf %10, %12 : vector<8x128xf32>
    %cst_11 = arith.constant 0.000000e+00 : f32
    %14 = vector.broadcast %cst_11 : f32 to vector<8x128xf32>
    %15 = arith.maximumf %13, %14 : vector<8x128xf32>
    %16 = arith.truncf %15 : vector<8x128xf32> to vector<8x128xbf16>
    %c0_12 = arith.constant 0 : index
    %c0_13 = arith.constant 0 : index
    %17 = vector.load %arg6[%c0_12, %c0_13] : memref<128x128xbf16, #tpu.memory_space<vmem>>, vector<128x128xbf16>
    %cst_14 = arith.constant dense<0.000000e+00> : vector<8x128xf32>
    %18 = tpu.matmul %16, %17, %cst_14 {dimension_numbers = #tpu.dot_dimension_numbers<[1], [0], [0], [1], [0, 0, 1, 1], [], []>} : vector<8x128xbf16>, vector<128x128xbf16>, vector<8x128xf32> -> vector<8x128xf32>
    %c0_15 = arith.constant 0 : index
    %c0_16 = arith.constant 0 : index
    %19 = vector.load %arg7[%c0_15, %c0_16] : memref<1x128xf32, #tpu.memory_space<vmem>>, vector<1x128xf32>
    %20 = vector.broadcast %19 : vector<1x128xf32> to vector<8x128xf32>
    %21 = arith.addf %18, %20 : vector<8x128xf32>
    %c0_17 = arith.constant 0 : index
    %c0_18 = arith.constant 0 : index
    %22 = vector.load %arg8[%c0_17, %c0_18] : memref<8x128xf32, #tpu.memory_space<vmem>>, vector<8x128xf32>
    tpu.vector_store %arg8[%c0_17, %c0_18], %21 {strides = array<i32>} : memref<8x128xf32, #tpu.memory_space<vmem>>, vector<8x128xf32>,
    return
  }
  func.func @transform_0(%arg0: i32) -> (i32, i32) {
    %c0_i32 = arith.constant 0 : i32
    %c0_i32_0 = arith.constant 0 : i32
    return %arg0, %c0_i32 : i32, i32
  }
  func.func @transform_1(%arg0: i32) -> (i32, i32) {
    %c0_i32 = arith.constant 0 : i32
    %c0_i32_0 = arith.constant 0 : i32
    %c0_i32_1 = arith.constant 0 : i32
    return %c0_i32, %c0_i32_0 : i32, i32
  }
  func.func @transform_2(%arg0: i32) -> (i32, i32) {
    %c0_i32 = arith.constant 0 : i32
    %c0_i32_0 = arith.constant 0 : i32
    %c0_i32_1 = arith.constant 0 : i32
    return %c0_i32, %c0_i32_0 : i32, i32
  }
  func.func @transform_3(%arg0: i32) -> (i32, i32) {
    %c0_i32 = arith.constant 0 : i32
    %c0_i32_0 = arith.constant 0 : i32
    %c0_i32_1 = arith.constant 0 : i32
    return %c0_i32, %c0_i32_0 : i32, i32
  }
  func.func @transform_4(%arg0: i32) -> (i32, i32) {
    %c0_i32 = arith.constant 0 : i32
    %c0_i32_0 = arith.constant 0 : i32
    %c0_i32_1 = arith.constant 0 : i32
    return %c0_i32, %c0_i32_0 : i32, i32
  }
  func.func @transform_5(%arg0: i32) -> (i32, i32) {
    %c0_i32 = arith.constant 0 : i32
    %c0_i32_0 = arith.constant 0 : i32
    %c0_i32_1 = arith.constant 0 : i32
    return %c0_i32, %c0_i32_0 : i32, i32
  }
  func.func @transform_6(%arg0: i32) -> (i32, i32) {
    %c0_i32 = arith.constant 0 : i32
    %c0_i32_0 = arith.constant 0 : i32
    %c0_i32_1 = arith.constant 0 : i32
    return %c0_i32, %c0_i32_0 : i32, i32
  }
  func.func @transform_7(%arg0: i32) -> (i32, i32) {
    %c0_i32 = arith.constant 0 : i32
    %c0_i32_0 = arith.constant 0 : i32
    return %arg0, %c0_i32 : i32, i32
  }
}

</mosaic_0001>

<llo_original>
// kernel: double_dqn_forward.1
$region0: #{double_dqn_forward.1}
  #allocation0 [shape = 'u32[]', space=smem, size = 0x4, offset = 0x4, fixed_abs, tag = 'smem constant byte address 0x4 - core index']
  #allocation1 [shape = 'u32[72,128]{1,0:T(1,128)}', space=vmem, size = 0x9000, scoped, tag = 'internal scratch']
  %s0 = inlined_call_operand.vmem [shape: bf16[8,4], index: 0, kind: input, shape index: {}]
  %s1 = inlined_call_operand.vmem [shape: bf16[4,128], index: 1, kind: input, shape index: {}]
  %s2 = inlined_call_operand.vmem [shape: f32[1,128], index: 2, kind: input, shape index: {}]
  %s3 = inlined_call_operand.vmem [shape: bf16[128,128], index: 3, kind: input, shape index: {}]
  %s4 = inlined_call_operand.vmem [shape: f32[1,128], index: 4, kind: input, shape index: {}]
  %s5 = inlined_call_operand.vmem [shape: bf16[128,128], index: 5, kind: input, shape index: {}]
  %s6 = inlined_call_operand.vmem [shape: f32[1,128], index: 6, kind: input, shape index: {}]
  %s7 = inlined_call_operand.vmem [shape: f32[8,128], index: 7, kind: output, shape index: {}]
  %s8 = sld [smem:[#allocation0]]
  $region38: #{double_dqn_forward.1} parent=0
    _
  %s10 = ssub.s32 1, %s8
  %s11 = scalar_select 0, %s10, %s8
  // Predicated region
  $region2: #{double_dqn_forward.1} parent=0 // pred_check
    _
  $region3: #{double_dqn_forward.1} parent=0 // pred_check_branch
    %13 = sbr.rel (0) target = $region5
  $region4: #{double_dqn_forward.1} parent=0 // pred_region
    _
  $region5: #{double_dqn_forward.1} parent=0 // pred_fallthru
    _
  // Predicated region
  $region6: #{double_dqn_forward.1} parent=0 // pred_check
    _
  $region7: #{double_dqn_forward.1} parent=0 // pred_check_branch
    %15 = sbr.rel (0) target = $region9
  $region8: #{double_dqn_forward.1} parent=0 // pred_region
    _
  $region9: #{double_dqn_forward.1} parent=0 // pred_fallthru
    _
  // Predicated region
  $region10: #{double_dqn_forward.1} parent=0 // pred_check
    _
  $region11: #{double_dqn_forward.1} parent=0 // pred_check_branch
    %17 = sbr.rel (0) target = $region13
  $region12: #{double_dqn_forward.1} parent=0 // pred_region
    _
  $region13: #{double_dqn_forward.1} parent=0 // pred_fallthru
    _
  // Predicated region
  $region14: #{double_dqn_forward.1} parent=0 // pred_check
    _
  $region15: #{double_dqn_forward.1} parent=0 // pred_check_branch
    %19 = sbr.rel (0) target = $region17
  $region16: #{double_dqn_forward.1} parent=0 // pred_region
    _
  $region17: #{double_dqn_forward.1} parent=0 // pred_fallthru
    _
  // Predicated region
  $region18: #{double_dqn_forward.1} parent=0 // pred_check
    _
  $region19: #{double_dqn_forward.1} parent=0 // pred_check_branch
    %21 = sbr.rel (0) target = $region21
  $region20: #{double_dqn_forward.1} parent=0 // pred_region
    _
  $region21: #{double_dqn_forward.1} parent=0 // pred_fallthru
    _
  // Predicated region
  $region22: #{double_dqn_forward.1} parent=0 // pred_check
    _
  $region23: #{double_dqn_forward.1} parent=0 // pred_check_branch
    %23 = sbr.rel (0) target = $region25
  $region24: #{double_dqn_forward.1} parent=0 // pred_region
    _
  $region25: #{double_dqn_forward.1} parent=0 // pred_fallthru
    _
  // Predicated region
  $region26: #{double_dqn_forward.1} parent=0 // pred_check
    _
  $region27: #{double_dqn_forward.1} parent=0 // pred_check_branch
    %25 = sbr.rel (0) target = $region29
  $region28: #{double_dqn_forward.1} parent=0 // pred_region
    _
  $region29: #{double_dqn_forward.1} parent=0 // pred_fallthru
    _
  %v27 = vld [vmem:[%s0] sm:$0xf]
  %v28 = vld [vmem:[%s1] sm:$0x3]
  %v29 = vld [vmem:[%s2] sm:$0x1]
  %v31 = vperm.slane %v29, 0
  %vm33 = vcmask 31744
  %v35 = vsel %vm33, %v27, 0
  %vm37 = vcmask 1041408
  %v39 = vsel %vm37, %v28, 0
  %41 = vmatpush.bf16.msra.mxu0 0
  %42 = vmatpush.bf16.msra.mxu0 0
  %43 = vmatpush.bf16.msra.mxu0 0
  %44 = vmatpush.bf16.msra.mxu0 0
  %45 = vmatpush.bf16.msra.mxu0 0
  %46 = vmatpush.bf16.msra.mxu0 0
  %47 = vmatpush.bf16.msra.mxu0 0
  %48 = vmatpush.bf16.msra.mxu0 %v39
  %49 = vmatmul.bf16.gmra.mxu0 %v35
  %v50 = vpop.f32.mrf.mxu0
  %v51 = vadd.f32 %v31, %v50
  %v52 = vpop.f32.mrf.mxu0
  %53 = vdwg.mxu0
  %v54 = vmax.f32 %v51, 0.0
  %v55 = vpack.c.bf16 %v54, %v54
  %v56 = vld [vmem:[%s3] sm:$0xf]
  %v57 = vld [vmem:[%s3 + $0x4] sm:$0xf]
  %v58 = vld [vmem:[%s3 + $0x8] sm:$0xf]
  %v59 = vld [vmem:[%s3 + $0xc] sm:$0xf]
  %v60 = vld [vmem:[%s3 + $0x10] sm:$0xf]
  %v61 = vld [vmem:[%s3 + $0x14] sm:$0xf]
  %v62 = vld [vmem:[%s3 + $0x18] sm:$0xf]
  %v63 = vld [vmem:[%s3 + $0x1c] sm:$0xf]
  %v64 = vld [vmem:[%s3 + $0x20] sm:$0xf]
  %v65 = vld [vmem:[%s3 + $0x24] sm:$0xf]
  %v66 = vld [vmem:[%s3 + $0x28] sm:$0xf]
  %v67 = vld [vmem:[%s3 + $0x2c] sm:$0xf]
  %v68 = vld [vmem:[%s3 + $0x30] sm:$0xf]
  %v69 = vld [vmem:[%s3 + $0x34] sm:$0xf]
  %v70 = vld [vmem:[%s3 + $0x38] sm:$0xf]
  %v71 = vld [vmem:[%s3 + $0x3c] sm:$0xf]
  %v72 = vld [vmem:[%s4] sm:$0x1]
  %v74 = vperm.slane %v72, 0
  %v92 = vunpack.c.l.b16 %v56
  %v93 = vunpack.c.l.b16 %v57
  %v94 = vunpack.c.l.b16 %v58
  %v95 = vunpack.c.l.b16 %v59
  %v96 = vunpack.c.l.b16 %v60
  %v97 = vunpack.c.l.b16 %v61
  %v98 = vunpack.c.l.b16 %v62
  %v99 = vunpack.c.l.b16 %v63
  %v100 = vunpack.c.l.b16 %v64
  %v101 = vunpack.c.l.b16 %v65
  %v102 = vunpack.c.l.b16 %v66
  %v103 = vunpack.c.l.b16 %v67
  %v104 = vunpack.c.l.b16 %v68
  %v105 = vunpack.c.l.b16 %v69
  %v106 = vunpack.c.l.b16 %v70
  %v107 = vunpack.c.l.b16 %v71
  %v108 = vpack.c.b16 %v93, %v92
  %v109 = vpack.c.b16 %v95, %v94
  %v110 = vpack.c.b16 %v97, %v96
  %v111 = vpack.c.b16 %v99, %v98
  %v112 = vpack.c.b16 %v101, %v100
  %v113 = vpack.c.b16 %v103, %v102
  %v114 = vpack.c.b16 %v105, %v104
  %v115 = vpack.c.b16 %v107, %v106
  %124 = vmatpush.bf16.msra.mxu0 %v115
  %125 = vmatpush.bf16.msra.mxu0 %v114
  %126 = vmatpush.bf16.msra.mxu0 %v113
  %127 = vmatpush.bf16.msra.mxu0 %v112
  %128 = vmatpush.bf16.msra.mxu0 %v111
  %129 = vmatpush.bf16.msra.mxu0 %v110
  %130 = vmatpush.bf16.msra.mxu0 %v109
  %131 = vmatpush.bf16.msra.mxu0 %v108
  %132 = vmatmul.bf16.gmra.mxu0 %v55
  %v133 = vpop.f32.mrf.mxu0
  %v134 = vadd.f32 %v74, %v133
  %v135 = vpop.f32.mrf.mxu0
  %136 = vdwg.mxu0
  %v137 = vmax.f32 %v134, 0.0
  %v138 = vpack.c.bf16 %v137, %v137
  %v139 = vld [vmem:[%s5] sm:$0xf]
  %v140 = vld [vmem:[%s5 + $0x4] sm:$0xf]
  %v141 = vld [vmem:[%s5 + $0x8] sm:$0xf]
  %v142 = vld [vmem:[%s5 + $0xc] sm:$0xf]
  %v143 = vld [vmem:[%s5 + $0x10] sm:$0xf]
  %v144 = vld [vmem:[%s5 + $0x14] sm:$0xf]
  %v145 = vld [vmem:[%s5 + $0x18] sm:$0xf]
  %v146 = vld [vmem:[%s5 + $0x1c] sm:$0xf]
  %v147 = vld [vmem:[%s5 + $0x20] sm:$0xf]
  %v148 = vld [vmem:[%s5 + $0x24] sm:$0xf]
  %v149 = vld [vmem:[%s5 + $0x28] sm:$0xf]
  %v150 = vld [vmem:[%s5 + $0x2c] sm:$0xf]
  %v151 = vld [vmem:[%s5 + $0x30] sm:$0xf]
  %v152 = vld [vmem:[%s5 + $0x34] sm:$0xf]
  %v153 = vld [vmem:[%s5 + $0x38] sm:$0xf]
  %v154 = vld [vmem:[%s5 + $0x3c] sm:$0xf]
  %v155 = vld [vmem:[%s6] sm:$0x1]
  %v157 = vperm.slane %v155, 0
  %v175 = vunpack.c.l.b16 %v139
  %v176 = vunpack.c.l.b16 %v140
  %v177 = vunpack.c.l.b16 %v141
  %v178 = vunpack.c.l.b16 %v142
  %v179 = vunpack.c.l.b16 %v143
  %v180 = vunpack.c.l.b16 %v144
  %v181 = vunpack.c.l.b16 %v145
  %v182 = vunpack.c.l.b16 %v146
  %v183 = vunpack.c.l.b16 %v147
  %v184 = vunpack.c.l.b16 %v148
  %v185 = vunpack.c.l.b16 %v149
  %v186 = vunpack.c.l.b16 %v150
  %v187 = vunpack.c.l.b16 %v151
  %v188 = vunpack.c.l.b16 %v152
  %v189 = vunpack.c.l.b16 %v153
  %v190 = vunpack.c.l.b16 %v154
  %v191 = vpack.c.b16 %v176, %v175
  %v192 = vpack.c.b16 %v178, %v177
  %v193 = vpack.c.b16 %v180, %v179
  %v194 = vpack.c.b16 %v182, %v181
  %v195 = vpack.c.b16 %v184, %v183
  %v196 = vpack.c.b16 %v186, %v185
  %v197 = vpack.c.b16 %v188, %v187
  %v198 = vpack.c.b16 %v190, %v189
  %207 = vmatpush.bf16.msra.mxu0 %v198
  %208 = vmatpush.bf16.msra.mxu0 %v197
  %209 = vmatpush.bf16.msra.mxu0 %v196
  %210 = vmatpush.bf16.msra.mxu0 %v195
  %211 = vmatpush.bf16.msra.mxu0 %v194
  %212 = vmatpush.bf16.msra.mxu0 %v193
  %213 = vmatpush.bf16.msra.mxu0 %v192
  %214 = vmatpush.bf16.msra.mxu0 %v191
  %215 = vmatmul.bf16.gmra.mxu0 %v138
  %v216 = vpop.f32.mrf.mxu0
  %v217 = vadd.f32 %v157, %v216
  %v218 = vpop.f32.mrf.mxu0
  %219 = vdwg.mxu0
  %220 = vst [vmem:[%s7] sm:$0xff] %v217
  // Predicated region
  $region30: #{double_dqn_forward.1} parent=0 // pred_check
    _
  $region31: #{double_dqn_forward.1} parent=0 // pred_check_branch
    %222 = sbr.rel (0) target = $region33
  $region32: #{double_dqn_forward.1} parent=0 // pred_region
    _
  $region33: #{double_dqn_forward.1} parent=0 // pred_fallthru
    _
  // Predicated region
  $region34: #{double_dqn_forward.1} parent=0 // pred_check
    _
  $region35: #{double_dqn_forward.1} parent=0 // pred_check_branch
    %224 = sbr.rel (0) target = $region37
  $region36: #{double_dqn_forward.1} parent=0 // pred_region
    _
  $region37: #{double_dqn_forward.1} parent=0 // pred_fallthru
    _

</llo_original>
